<compile_context>
chip_gen: v6e
topology: v6e:2x2x1
jax: 0.10.0
libtpu: 0.0.40
codegen_flags: <defaults>
</compile_context>

<pallas_src>
import jax
import jax.numpy as jnp
from jax.experimental import pallas as pl
from jax.experimental.pallas import tpu as pltpu

CANVAS = 128


def _fuse_kernel(le_ref, re_ref, no_ref, mo_ref, o_ref):
    # Zero the canvas, then max-compose each W-padded map into its row band.
    # All slices are whole (8, 128) tiles: row offsets/extents are multiples
    # of 8 and the lane dim is always the full 128 columns.
    o_ref[...] = jnp.zeros_like(o_ref)

    # Eyes occupy canvas rows 24:64 (disjoint along W, but both are already
    # zero-padded to the full 128 lanes, so a plain max composes them).
    eyes = jnp.maximum(le_ref[...], re_ref[...])
    o_ref[:, 24:64, :] = jnp.maximum(eyes, jnp.zeros_like(eyes))

    # Nose occupies rows 48:80 (overlaps the eye band in rows 48:64).
    o_ref[:, 48:80, :] = jnp.maximum(o_ref[:, 48:80, :], no_ref[...])

    # Mouth (pre-padded to rows 64:104 so its band is sublane-aligned; real
    # data sits in rows 70:102) overlaps the nose band in rows 64:80.
    o_ref[:, 64:104, :] = jnp.maximum(o_ref[:, 64:104, :], mo_ref[...])


def local_fuser(f_left_eye, f_right_eye, f_nose, f_mouth, *, block_nc=16):
    # Spatial shapes implied by the fixed pads (all reach a 128x128 canvas).
    assert f_left_eye.shape[2:] == (40, 40), f_left_eye.shape
    assert f_right_eye.shape[2:] == (40, 40), f_right_eye.shape
    assert f_nose.shape[2:] == (32, 40), f_nose.shape
    assert f_mouth.shape[2:] == (32, 48), f_mouth.shape
    N, C = f_left_eye.shape[:2]
    assert (f_right_eye.shape[:2] == (N, C) and f_nose.shape[:2] == (N, C)
            and f_mouth.shape[:2] == (N, C))
    dtype = f_left_eye.dtype

    # Pad only the W (lane) axis to the 128-wide canvas so every in-kernel
    # store stays lane-aligned; the H placement is fused into the kernel.
    # The mouth also gets 6 top / 2 bottom zero rows so its canvas row band
    # (64:104) starts/ends on a sublane (multiple-of-8) boundary.
    # TODO(synk): fold the W zero-padding into the kernel too (needs
    # lane-unaligned masked stores); H padding + composition are fused.
    def wpad(x, left, right, top=0, bottom=0):
        return jnp.pad(x, ((0, 0), (0, 0), (top, bottom), (left, right)))

    le = wpad(f_left_eye, 24, 64)          # canvas rows 24:64
    re = wpad(f_right_eye, 64, 24)         # canvas rows 24:64
    no = wpad(f_nose, 44, 44)              # canvas rows 48:80
    mo = wpad(f_mouth, 40, 40, 6, 2)       # canvas rows 64:104 (data 70:102)

    NC = N * C
    le = le.reshape(NC, 40, CANVAS)
    re = re.reshape(NC, 40, CANVAS)
    no = no.reshape(NC, 32, CANVAS)
    mo = mo.reshape(NC, 40, CANVAS)

    # Block over the fused N*C axis; keep >= 2 grid steps when possible so
    # both v7x TensorCores get work (axis is marked "parallel").
    b = max(1, min(block_nc, NC))
    if NC >= 2:
        b = min(b, pl.cdiv(NC, 2))
    grid = (pl.cdiv(NC, b),)

    out = pl.pallas_call(
        _fuse_kernel,
        out_shape=jax.ShapeDtypeStruct((NC, CANVAS, CANVAS), dtype),
        grid=grid,
        in_specs=[
            pl.BlockSpec((b, 40, CANVAS), lambda i: (i, 0, 0)),
            pl.BlockSpec((b, 40, CANVAS), lambda i: (i, 0, 0)),
            pl.BlockSpec((b, 32, CANVAS), lambda i: (i, 0, 0)),
            pl.BlockSpec((b, 40, CANVAS), lambda i: (i, 0, 0)),
        ],
        out_specs=pl.BlockSpec((b, CANVAS, CANVAS), lambda i: (i, 0, 0)),
        compiler_params=pltpu.CompilerParams(
            dimension_semantics=("parallel",),
        ),
    )(le, re, no, mo)
    return out.reshape(N, C, CANVAS, CANVAS)


def _reference(f_left_eye, f_right_eye, f_nose, f_mouth):
    # Pure-JAX reference mirroring the PyTorch forward exactly.
    def pad_hw(x, left, right, top, bottom):
        return jnp.pad(x, ((0, 0), (0, 0), (top, bottom), (left, right)))

    le = pad_hw(f_left_eye, 24, 64, 24, 64)
    re = pad_hw(f_right_eye, 64, 24, 24, 64)
    no = pad_hw(f_nose, 44, 44, 48, 48)
    mo = pad_hw(f_mouth, 40, 40, 70, 26)
    return jnp.max(jnp.stack([le, re, no, mo], axis=0), axis=0)


if __name__ == "__main__":
    key = jax.random.PRNGKey(0)
    k1, k2, k3, k4 = jax.random.split(key, 4)

    # Shapes implied by the fixed pads: eyes 40x40, nose 32x40, mouth 32x48.
    N, C = 2, 4
    f_left_eye = jax.random.normal(k1, (N, C, 40, 40), dtype=jnp.float32)
    f_right_eye = jax.random.normal(k2, (N, C, 40, 40), dtype=jnp.float32)
    f_nose = jax.random.normal(k3, (N, C, 32, 40), dtype=jnp.float32)
    f_mouth = jax.random.normal(k4, (N, C, 32, 48), dtype=jnp.float32)

    out = local_fuser(f_left_eye, f_right_eye, f_nose, f_mouth)
    out = jax.block_until_ready(out)

    ref = _reference(f_left_eye, f_right_eye, f_nose, f_mouth)
    assert out.shape == (N, C, 128, 128), out.shape
    assert jnp.array_equal(out, ref), "mismatch vs reference"

    print("KERNEL_OK")
</pallas_src>

<mosaic_0001>
module attributes {stable_mosaic.version = 11 : i64} {
  func.func @_fuse_kernel(%arg0: i32, %arg1: memref<4x40x128xf32, #tpu.memory_space<vmem>>, %arg2: memref<4x40x128xf32, #tpu.memory_space<vmem>>, %arg3: memref<4x32x128xf32, #tpu.memory_space<vmem>>, %arg4: memref<4x40x128xf32, #tpu.memory_space<vmem>>, %arg5: memref<4x128x128xf32, #tpu.memory_space<vmem>>) attributes {dimension_semantics = [#tpu.dimension_semantics<parallel>], iteration_bounds = array<i64: 2>, scalar_prefetch = 0 : i64, scratch_operands = 0 : i64, tpu.core_type = #tpu.core_type<tc>, window_params = [{transform_indices = @transform_0, window_bounds = array<i64: 4, 40, 128>}, {transform_indices = @transform_1, window_bounds = array<i64: 4, 40, 128>}, {transform_indices = @transform_2, window_bounds = array<i64: 4, 32, 128>}, {transform_indices = @transform_3, window_bounds = array<i64: 4, 40, 128>}, {transform_indices = @transform_4, window_bounds = array<i64: 4, 128, 128>}]} {
    %cst = arith.constant 0.000000e+00 : f32
    %0 = vector.broadcast %cst : f32 to vector<4x128x128xf32>
    %c0 = arith.constant 0 : index
    %c0_0 = arith.constant 0 : index
    %c0_1 = arith.constant 0 : index
    %1 = vector.load %arg5[%c0, %c0_0, %c0_1] : memref<4x128x128xf32, #tpu.memory_space<vmem>>, vector<4x128x128xf32>
    tpu.vector_store %arg5[%c0, %c0_0, %c0_1], %0 {strides = array<i32>} : memref<4x128x128xf32, #tpu.memory_space<vmem>>, vector<4x128x128xf32>,
    %c0_2 = arith.constant 0 : index
    %c0_3 = arith.constant 0 : index
    %c0_4 = arith.constant 0 : index
    %2 = vector.load %arg1[%c0_2, %c0_3, %c0_4] : memref<4x40x128xf32, #tpu.memory_space<vmem>>, vector<4x40x128xf32>
    %c0_5 = arith.constant 0 : index
    %c0_6 = arith.constant 0 : index
    %c0_7 = arith.constant 0 : index
    %3 = vector.load %arg2[%c0_5, %c0_6, %c0_7] : memref<4x40x128xf32, #tpu.memory_space<vmem>>, vector<4x40x128xf32>
    %4 = arith.maximumf %2, %3 : vector<4x40x128xf32>
    %cst_8 = arith.constant 0.000000e+00 : f32
    %5 = vector.broadcast %cst_8 : f32 to vector<4x40x128xf32>
    %6 = arith.maximumf %4, %5 : vector<4x40x128xf32>
    %c0_9 = arith.constant 0 : index
    %c24 = arith.constant 24 : index
    %c0_10 = arith.constant 0 : index
    %7 = vector.load %arg5[%c0_9, %c24, %c0_10] : memref<4x128x128xf32, #tpu.memory_space<vmem>>, vector<4x40x128xf32>
    tpu.vector_store %arg5[%c0_9, %c24, %c0_10], %6 {strides = array<i32>} : memref<4x128x128xf32, #tpu.memory_space<vmem>>, vector<4x40x128xf32>,
    %c0_11 = arith.constant 0 : index
    %c48 = arith.constant 48 : index
    %c0_12 = arith.constant 0 : index
    %8 = vector.load %arg5[%c0_11, %c48, %c0_12] : memref<4x128x128xf32, #tpu.memory_space<vmem>>, vector<4x32x128xf32>
    %c0_13 = arith.constant 0 : index
    %c0_14 = arith.constant 0 : index
    %c0_15 = arith.constant 0 : index
    %9 = vector.load %arg3[%c0_13, %c0_14, %c0_15] : memref<4x32x128xf32, #tpu.memory_space<vmem>>, vector<4x32x128xf32>
    %10 = arith.maximumf %8, %9 : vector<4x32x128xf32>
    %c0_16 = arith.constant 0 : index
    %c48_17 = arith.constant 48 : index
    %c0_18 = arith.constant 0 : index
    %11 = vector.load %arg5[%c0_16, %c48_17, %c0_18] : memref<4x128x128xf32, #tpu.memory_space<vmem>>, vector<4x32x128xf32>
    tpu.vector_store %arg5[%c0_16, %c48_17, %c0_18], %10 {strides = array<i32>} : memref<4x128x128xf32, #tpu.memory_space<vmem>>, vector<4x32x128xf32>,
    %c0_19 = arith.constant 0 : index
    %c64 = arith.constant 64 : index
    %c0_20 = arith.constant 0 : index
    %12 = vector.load %arg5[%c0_19, %c64, %c0_20] : memref<4x128x128xf32, #tpu.memory_space<vmem>>, vector<4x40x128xf32>
    %c0_21 = arith.constant 0 : index
    %c0_22 = arith.constant 0 : index
    %c0_23 = arith.constant 0 : index
    %13 = vector.load %arg4[%c0_21, %c0_22, %c0_23] : memref<4x40x128xf32, #tpu.memory_space<vmem>>, vector<4x40x128xf32>
    %14 = arith.maximumf %12, %13 : vector<4x40x128xf32>
    %c0_24 = arith.constant 0 : index
    %c64_25 = arith.constant 64 : index
    %c0_26 = arith.constant 0 : index
    %15 = vector.load %arg5[%c0_24, %c64_25, %c0_26] : memref<4x128x128xf32, #tpu.memory_space<vmem>>, vector<4x40x128xf32>
    tpu.vector_store %arg5[%c0_24, %c64_25, %c0_26], %14 {strides = array<i32>} : memref<4x128x128xf32, #tpu.memory_space<vmem>>, vector<4x40x128xf32>,
    return
  }
  func.func @transform_0(%arg0: i32) -> (i32, i32, i32) {
    %c0_i32 = arith.constant 0 : i32
    %c0_i32_0 = arith.constant 0 : i32
    %c0_i32_1 = arith.constant 0 : i32
    return %arg0, %c0_i32, %c0_i32_0 : i32, i32, i32
  }
  func.func @transform_1(%arg0: i32) -> (i32, i32, i32) {
    %c0_i32 = arith.constant 0 : i32
    %c0_i32_0 = arith.constant 0 : i32
    %c0_i32_1 = arith.constant 0 : i32
    return %arg0, %c0_i32, %c0_i32_0 : i32, i32, i32
  }
  func.func @transform_2(%arg0: i32) -> (i32, i32, i32) {
    %c0_i32 = arith.constant 0 : i32
    %c0_i32_0 = arith.constant 0 : i32
    %c0_i32_1 = arith.constant 0 : i32
    return %arg0, %c0_i32, %c0_i32_0 : i32, i32, i32
  }
  func.func @transform_3(%arg0: i32) -> (i32, i32, i32) {
    %c0_i32 = arith.constant 0 : i32
    %c0_i32_0 = arith.constant 0 : i32
    %c0_i32_1 = arith.constant 0 : i32
    return %arg0, %c0_i32, %c0_i32_0 : i32, i32, i32
  }
  func.func @transform_4(%arg0: i32) -> (i32, i32, i32) {
    %c0_i32 = arith.constant 0 : i32
    %c0_i32_0 = arith.constant 0 : i32
    %c0_i32_1 = arith.constant 0 : i32
    return %arg0, %c0_i32, %c0_i32_0 : i32, i32, i32
  }
}

</mosaic_0001>

<llo_original>
// kernel: tpu_custom_call.1
$region0: #{tpu_custom_call.1}
  #allocation0 [shape = 'u32[]', space=smem, size = 0x4, offset = 0x4, fixed_abs, tag = 'smem constant byte address 0x4 - core index']
  #allocation1 [shape = 'u32[144,128]{1,0:T(1,128)}', space=vmem, size = 0x12000, scoped, tag = 'internal scratch']
  %s0 = inlined_call_operand.hbm [shape: f32[8,40,128], index: 0, kind: input, shape index: {}]
  %s1 = inlined_call_operand.hbm [shape: f32[8,40,128], index: 1, kind: input, shape index: {}]
  %s2 = inlined_call_operand.hbm [shape: f32[8,32,128], index: 2, kind: input, shape index: {}]
  %s3 = inlined_call_operand.hbm [shape: f32[8,40,128], index: 3, kind: input, shape index: {}]
  %s4 = inlined_call_operand.hbm [shape: f32[8,128,128], index: 4, kind: output, shape index: {}]
  %s5 = sld [smem:[#allocation0]]
  $region65: #{tpu_custom_call.1} parent=0
    _
  %s7 = ssub.s32 1, %s5
  %s8 = scalar_select 0, %s7, %s5
  $region1: #{tpu_custom_call.1} parent=0
    #allocation2 [shape = 'u8[163840]{0}', space=vmem, size = 0x28000, scoped, tag = 'input window, operand 0']
    #allocation3 [shape = 's32[2]{0}', space=sflag, size = 0x8, scoped, tag = 'scoped memory for tpu_custom_call.1']
    #allocation4 [shape = 's32[2]{0}', space=sflag, size = 0x8, scoped, tag = 'scoped memory for tpu_custom_call.1']
    #allocation5 [shape = 'u8[163840]{0}', space=vmem, size = 0x28000, scoped, tag = 'input window, operand 1']
    #allocation6 [shape = 's32[2]{0}', space=sflag, size = 0x8, scoped, tag = 'scoped memory for tpu_custom_call.1']
    #allocation7 [shape = 'u8[131072]{0}', space=vmem, size = 0x20000, scoped, tag = 'input window, operand 2']
    #allocation8 [shape = 'u8[163840]{0}', space=vmem, size = 0x28000, scoped, tag = 'input window, operand 3']
    #allocation9 [shape = 's32[2]{0}', space=sflag, size = 0x8, scoped, tag = 'scoped memory for tpu_custom_call.1']
    #allocation10 [shape = 'u8[524288]{0}', space=vmem, size = 0x80000, scoped, tag = 'output window, operand 0']
    %9 = vsyncpa [#allocation3], 0
    %s10 = scalar_lea.sflag [#allocation3], 1
    %11 = vsyncpa %s10, 0
    %12 = vsyncpa [#allocation6], 0
    %s13 = scalar_lea.sflag [#allocation6], 1
    %14 = vsyncpa %s13, 0
    %15 = vsyncpa [#allocation9], 0
    %s16 = scalar_lea.sflag [#allocation9], 1
    %17 = vsyncpa %s16, 0
    %18 = vsyncpa [#allocation4], 0
    %s19 = scalar_lea.sflag [#allocation4], 1
    %20 = vsyncpa %s19, 0
    loop: start=0, step=1, limit=4
    $region2: #{tpu_custom_call.1} parent=1 // loop_pre_header
      _
    $region3: #{tpu_custom_call.1} parent=1 // loop_header
      %s22 = sphi 0, %s26
      %p23 = scmp.ge.s32.totalorder %s22, 4
      %s32 = sphi 0, %s34
      %s35 = sphi 0, %s32
      %s36 = sphi 0, %s35
      %s52 = sphi 0, %s36
      %s58 = sphi 0, %s60
      %s61 = sphi 0, %s58
      %s62 = sphi 0, %s61
      %s78 = sphi 0, %s62
      %s84 = sphi 0, %s86
      %s87 = sphi 0, %s84
      %s88 = sphi 0, %s87
      %s104 = sphi 0, %s88
      %s110 = sphi 0, %s112
      %s113 = sphi 0, %s110
      %s114 = sphi 0, %s113
      %s130 = sphi 0, %s114
      %s136 = sphi 0, %s138
      %s139 = sphi 0, %s136
      %s140 = sphi 0, %s139
      %s156 = sphi 0, %s140
    $region4: #{tpu_custom_call.1} parent=1 // loop_header_branch
      %25 = sbr.rel (%p23) target = $region8
    $region5: #{tpu_custom_call.1} parent=1 // loop_body
      %s27 = ssub.s32 %s22, 1
      %s28 = ssub.s32 %s22, 2
      %s29 = sadd.s32 %s22, 1
      %s30 = ssub.s32 %s22, %s29
      %p31 = scmp.eq.s32.totalorder %s30, 0
      %s33 = sadd.s32 %s32, 1
      %s34 = scalar_select %p31, %s32, %s33
      %p37 = pneg %p31
      %p38 = scmp.eq.s32.totalorder %s22, 1
      %p39 = por %p37, %p38
      %p40 = scmp.ne.s32.totalorder %s32, %s35
      %p41 = scmp.eq.s32.totalorder %s22, 0
      %p42 = por %p40, %p41
      %p43 = scmp.ne.s32.totalorder %s32, %s35
      %p44 = scmp.eq.s32.totalorder %s27, 1
      %p45 = por %p43, %p44
      %p46 = scmp.ne.s32.totalorder %s35, %s36
      %p47 = scmp.eq.s32.totalorder %s27, 0
      %p48 = por %p46, %p47
      %p49 = scmp.ne.s32.totalorder %s35, %s36
      %p50 = scmp.eq.s32.totalorder %s28, 1
      %p51 = por %p49, %p50
      %p53 = scmp.ne.s32.totalorder %s36, %s52
      %p54 = scmp.eq.s32.totalorder %s28, 0
      %p55 = por %p53, %p54
      %s56 = ssub.s32 %s22, %s29
      %p57 = scmp.eq.s32.totalorder %s56, 0
      %s59 = sadd.s32 %s58, 1
      %s60 = scalar_select %p57, %s58, %s59
      %p63 = pneg %p57
      %p64 = scmp.eq.s32.totalorder %s22, 1
      %p65 = por %p63, %p64
      %p66 = scmp.ne.s32.totalorder %s58, %s61
      %p67 = scmp.eq.s32.totalorder %s22, 0
      %p68 = por %p66, %p67
      %p69 = scmp.ne.s32.totalorder %s58, %s61
      %p70 = scmp.eq.s32.totalorder %s27, 1
      %p71 = por %p69, %p70
      %p72 = scmp.ne.s32.totalorder %s61, %s62
      %p73 = scmp.eq.s32.totalorder %s27, 0
      %p74 = por %p72, %p73
      %p75 = scmp.ne.s32.totalorder %s61, %s62
      %p76 = scmp.eq.s32.totalorder %s28, 1
      %p77 = por %p75, %p76
      %p79 = scmp.ne.s32.totalorder %s62, %s78
      %p80 = scmp.eq.s32.totalorder %s28, 0
      %p81 = por %p79, %p80
      %s82 = ssub.s32 %s22, %s29
      %p83 = scmp.eq.s32.totalorder %s82, 0
      %s85 = sadd.s32 %s84, 1
      %s86 = scalar_select %p83, %s84, %s85
      %p89 = pneg %p83
      %p90 = scmp.eq.s32.totalorder %s22, 1
      %p91 = por %p89, %p90
      %p92 = scmp.ne.s32.totalorder %s84, %s87
      %p93 = scmp.eq.s32.totalorder %s22, 0
      %p94 = por %p92, %p93
      %p95 = scmp.ne.s32.totalorder %s84, %s87
      %p96 = scmp.eq.s32.totalorder %s27, 1
      %p97 = por %p95, %p96
      %p98 = scmp.ne.s32.totalorder %s87, %s88
      %p99 = scmp.eq.s32.totalorder %s27, 0
      %p100 = por %p98, %p99
      %p101 = scmp.ne.s32.totalorder %s87, %s88
      %p102 = scmp.eq.s32.totalorder %s28, 1
      %p103 = por %p101, %p102
      %p105 = scmp.ne.s32.totalorder %s88, %s104
      %p106 = scmp.eq.s32.totalorder %s28, 0
      %p107 = por %p105, %p106
      %s108 = ssub.s32 %s22, %s29
      %p109 = scmp.eq.s32.totalorder %s108, 0
      %s111 = sadd.s32 %s110, 1
      %s112 = scalar_select %p109, %s110, %s111
      %p115 = pneg %p109
      %p116 = scmp.eq.s32.totalorder %s22, 1
      %p117 = por %p115, %p116
      %p118 = scmp.ne.s32.totalorder %s110, %s113
      %p119 = scmp.eq.s32.totalorder %s22, 0
      %p120 = por %p118, %p119
      %p121 = scmp.ne.s32.totalorder %s110, %s113
      %p122 = scmp.eq.s32.totalorder %s27, 1
      %p123 = por %p121, %p122
      %p124 = scmp.ne.s32.totalorder %s113, %s114
      %p125 = scmp.eq.s32.totalorder %s27, 0
      %p126 = por %p124, %p125
      %p127 = scmp.ne.s32.totalorder %s113, %s114
      %p128 = scmp.eq.s32.totalorder %s28, 1
      %p129 = por %p127, %p128
      %p131 = scmp.ne.s32.totalorder %s114, %s130
      %p132 = scmp.eq.s32.totalorder %s28, 0
      %p133 = por %p131, %p132
      %s134 = ssub.s32 %s22, %s29
      %p135 = scmp.eq.s32.totalorder %s134, 0
      %s137 = sadd.s32 %s136, 1
      %s138 = scalar_select %p135, %s136, %s137
      %p141 = pneg %p135
      %p142 = scmp.eq.s32.totalorder %s22, 1
      %p143 = por %p141, %p142
      %p144 = scmp.ne.s32.totalorder %s136, %s139
      %p145 = scmp.eq.s32.totalorder %s22, 0
      %p146 = por %p144, %p145
      %p147 = scmp.ne.s32.totalorder %s136, %s139
      %p148 = scmp.eq.s32.totalorder %s27, 1
      %p149 = por %p147, %p148
      %p150 = scmp.ne.s32.totalorder %s139, %s140
      %p151 = scmp.eq.s32.totalorder %s27, 0
      %p152 = por %p150, %p151
      %p153 = scmp.ne.s32.totalorder %s139, %s140
      %p154 = scmp.eq.s32.totalorder %s28, 1
      %p155 = por %p153, %p154
      %p157 = scmp.ne.s32.totalorder %s140, %s156
      %p158 = scmp.eq.s32.totalorder %s28, 0
      %p159 = por %p157, %p158
      %p160 = scmp.le.s32.totalorder 1, %s22
      %p161 = scmp.lt.s32.totalorder %s22, 3
      %p162 = pnand %p160, %p161
      %p163 = pneg %p162
      // Predicated region
      $region9: #{tpu_custom_call.1} parent=5 // pred_check
        _
      $region10: #{tpu_custom_call.1} parent=5 // pred_check_branch
        %165 = sbr.rel (%p162) target = $region12
      $region11: #{tpu_custom_call.1} parent=5 // pred_region
        %s166 = ssub.s32 %s22, 1
      $region12: #{tpu_custom_call.1} parent=5 // pred_fallthru
        _
      %p167 = scmp.lt.s32.totalorder %s22, 2
      // Predicated region
      $region13: #{tpu_custom_call.1} parent=5 // pred_check
        %p168 = pneg %p167
      $region14: #{tpu_custom_call.1} parent=5 // pred_check_branch
        %170 = sbr.rel (%p168) target = $region16
      $region15: #{tpu_custom_call.1} parent=5 // pred_region
        // Predicated region
        $region17: #{tpu_custom_call.1} parent=15 // pred_check
          %p171 = pneg %p42
        $region18: #{tpu_custom_call.1} parent=15 // pred_check_branch
          %173 = sbr.rel (%p171) target = $region20
        $region19: #{tpu_custom_call.1} parent=15 // pred_region
          %s174 = sand.u32 %s32, 1
          %s175 = scalar_lea.sflag [#allocation3], %s174
          %s176 = sand.u32 %s32, 1
          %s177 = smul.addr %s176, 160
          %s178 = scalar_lea.vmem [#allocation2], %s177
          %s179 = smul.u32 4, %s22
          %s181 = ssub.s32 2560, 2560
          %182 = vsyncadd %s175, %s181
          %s183 = smul.addr %s179, 5
          %s184 = smul.addr %s183, 128
          %s185 = scalar_lea.hbm %s0, %s184
          %s186 = sshll.u32 %s178, 4
          %s187 = int_to_ptr.vmem [resolvable:$true] %s186
          %192 = dma.hbm_to_vmem [thread:$0]  %s185, 2560, %s187, %s175, 128, 128, 8
        $region20: #{tpu_custom_call.1} parent=15 // pred_fallthru
          _
        // Predicated region
        $region21: #{tpu_custom_call.1} parent=15 // pred_check
          %p193 = pneg %p68
        $region22: #{tpu_custom_call.1} parent=15 // pred_check_branch
          %195 = sbr.rel (%p193) target = $region24
        $region23: #{tpu_custom_call.1} parent=15 // pred_region
          %s196 = sand.u32 %s22, 1
          %s197 = scalar_lea.sflag [#allocation6], %s196
          %s198 = sand.u32 %s58, 1
          %s199 = smul.addr %s198, 160
          %s200 = scalar_lea.vmem [#allocation5], %s199
          %s201 = smul.u32 4, %s22
          %s203 = ssub.s32 2560, 2560
          %204 = vsyncadd %s197, %s203
          %s205 = smul.addr %s201, 5
          %s206 = smul.addr %s205, 128
          %s207 = scalar_lea.hbm %s1, %s206
          %s208 = sshll.u32 %s200, 4
          %s209 = int_to_ptr.vmem [resolvable:$true] %s208
          %214 = dma.hbm_to_vmem [thread:$0]  %s207, 2560, %s209, %s197, 128, 128, 8
        $region24: #{tpu_custom_call.1} parent=15 // pred_fallthru
          _
        // Predicated region
        $region25: #{tpu_custom_call.1} parent=15 // pred_check
          %p215 = pneg %p94
        $region26: #{tpu_custom_call.1} parent=15 // pred_check_branch
          %217 = sbr.rel (%p215) target = $region28
        $region27: #{tpu_custom_call.1} parent=15 // pred_region
          %s218 = sand.u32 %s22, 1
          %s219 = scalar_lea.sflag [#allocation6], %s218
          %s220 = sand.u32 %s84, 1
          %s221 = smul.addr %s220, 128
          %s222 = scalar_lea.vmem [#allocation7], %s221
          %s223 = smul.u32 4, %s22
          %s225 = ssub.s32 2048, 2048
          %226 = vsyncadd %s219, %s225
          %s227 = smul.addr %s223, 4
          %s228 = smul.addr %s227, 128
          %s229 = scalar_lea.hbm %s2, %s228
          %s230 = sshll.u32 %s222, 4
          %s231 = int_to_ptr.vmem [resolvable:$true] %s230
          %236 = dma.hbm_to_vmem [thread:$0]  %s229, 2048, %s231, %s219, 128, 128, 8
        $region28: #{tpu_custom_call.1} parent=15 // pred_fallthru
          _
        // Predicated region
        $region29: #{tpu_custom_call.1} parent=15 // pred_check
          %p237 = pneg %p120
        $region30: #{tpu_custom_call.1} parent=15 // pred_check_branch
          %239 = sbr.rel (%p237) target = $region32
        $region31: #{tpu_custom_call.1} parent=15 // pred_region
          %s240 = sand.u32 %s110, 1
          %s241 = scalar_lea.sflag [#allocation9], %s240
          %s242 = sand.u32 %s110, 1
          %s243 = smul.addr %s242, 160
          %s244 = scalar_lea.vmem [#allocation8], %s243
          %s245 = smul.u32 4, %s22
          %s247 = ssub.s32 2560, 2560
          %248 = vsyncadd %s241, %s247
          %s249 = smul.addr %s245, 5
          %s250 = smul.addr %s249, 128
          %s251 = scalar_lea.hbm %s3, %s250
          %s252 = sshll.u32 %s244, 4
          %s253 = int_to_ptr.vmem [resolvable:$true] %s252
          %258 = dma.hbm_to_vmem [thread:$0]  %s251, 2560, %s253, %s241, 128, 128, 8
        $region32: #{tpu_custom_call.1} parent=15 // pred_fallthru
          _
      $region16: #{tpu_custom_call.1} parent=5 // pred_fallthru
        _
      %p259 = scmp.le.s32.totalorder 1, %s22
      %p260 = scmp.lt.s32.totalorder %s22, 3
      %p261 = pnand %p259, %p260
      %p262 = pneg %p261
      // Predicated region
      $region33: #{tpu_custom_call.1} parent=5 // pred_check
        _
      $region34: #{tpu_custom_call.1} parent=5 // pred_check_branch
        %264 = sbr.rel (%p261) target = $region36
      $region35: #{tpu_custom_call.1} parent=5 // pred_region
        %s265 = ssub.s32 %s22, 1
        %s266 = sand.u32 %s35, 1
        %s267 = scalar_lea.sflag [#allocation3], %s266
        %s268 = sand.u32 %s35, 1
        %s269 = smul.addr %s268, 160
        %s270 = scalar_lea.vmem [#allocation2], %s269
        // Predicated region
        $region37: #{tpu_custom_call.1} parent=35 // pred_check
          %p271 = pneg %p48
        $region38: #{tpu_custom_call.1} parent=35 // pred_check_branch
          %273 = sbr.rel (%p271) target = $region40
        $region39: #{tpu_custom_call.1} parent=35 // pred_region
          %274 = dma.done %s267, 2560
        $region40: #{tpu_custom_call.1} parent=35 // pred_fallthru
          _
        %s275 = sand.u32 %s27, 1
        %s276 = scalar_lea.sflag [#allocation6], %s275
        %s277 = sand.u32 %s61, 1
        %s278 = smul.addr %s277, 160
        %s279 = scalar_lea.vmem [#allocation5], %s278
        // Predicated region
        $region41: #{tpu_custom_call.1} parent=35 // pred_check
          %p280 = pneg %p74
        $region42: #{tpu_custom_call.1} parent=35 // pred_check_branch
          %282 = sbr.rel (%p280) target = $region44
        $region43: #{tpu_custom_call.1} parent=35 // pred_region
          %283 = dma.done %s276, 2560
        $region44: #{tpu_custom_call.1} parent=35 // pred_fallthru
          _
        %s284 = sand.u32 %s27, 1
        %s285 = scalar_lea.sflag [#allocation6], %s284
        %s286 = sand.u32 %s87, 1
        %s287 = smul.addr %s286, 128
        %s288 = scalar_lea.vmem [#allocation7], %s287
        // Predicated region
        $region45: #{tpu_custom_call.1} parent=35 // pred_check
          %p289 = pneg %p100
        $region46: #{tpu_custom_call.1} parent=35 // pred_check_branch
          %291 = sbr.rel (%p289) target = $region48
        $region47: #{tpu_custom_call.1} parent=35 // pred_region
          %292 = dma.done %s285, 2048
        $region48: #{tpu_custom_call.1} parent=35 // pred_fallthru
          _
        %s293 = sand.u32 %s113, 1
        %s294 = scalar_lea.sflag [#allocation9], %s293
        %s295 = sand.u32 %s113, 1
        %s296 = smul.addr %s295, 160
        %s297 = scalar_lea.vmem [#allocation8], %s296
        // Predicated region
        $region49: #{tpu_custom_call.1} parent=35 // pred_check
          %p298 = pneg %p126
        $region50: #{tpu_custom_call.1} parent=35 // pred_check_branch
          %300 = sbr.rel (%p298) target = $region52
        $region51: #{tpu_custom_call.1} parent=35 // pred_region
          %301 = dma.done %s294, 2560
        $region52: #{tpu_custom_call.1} parent=35 // pred_fallthru
          _
        %s302 = sand.u32 %s35, 1
        %s303 = scalar_lea.sflag [#allocation3], %s302
        %s304 = sand.u32 %s35, 1
        %s305 = smul.addr %s304, 160
        %s306 = scalar_lea.vmem [#allocation2], %s305
        %p307 = pneg %p48
        %p308 = pneg %p45
        %s309 = sand.u32 %s27, 1
        %s310 = scalar_lea.sflag [#allocation6], %s309
        %s311 = sand.u32 %s61, 1
        %s312 = smul.addr %s311, 160
        %s313 = scalar_lea.vmem [#allocation5], %s312
        %p314 = pneg %p74
        %p315 = pneg %p71
        %s316 = sand.u32 %s27, 1
        %s317 = scalar_lea.sflag [#allocation6], %s316
        %s318 = sand.u32 %s87, 1
        %s319 = smul.addr %s318, 128
        %s320 = scalar_lea.vmem [#allocation7], %s319
        %p321 = pneg %p100
        %p322 = pneg %p97
        %s323 = sand.u32 %s113, 1
        %s324 = scalar_lea.sflag [#allocation9], %s323
        %s325 = sand.u32 %s113, 1
        %s326 = smul.addr %s325, 160
        %s327 = scalar_lea.vmem [#allocation8], %s326
        %p328 = pneg %p126
        %p329 = pneg %p123
        %p330 = pneg %p152
        %p331 = pneg %p149
        %s332 = sand.u32 %s139, 1
        %s333 = scalar_lea.sflag [#allocation4], %s332
        %s334 = sand.u32 %s139, 1
        %s335 = smul.addr %s334, 512
        %s336 = scalar_lea.vmem [#allocation10], %s335
        %s337 = smul.u32 4, %s27
        %s338 = smul.u32 4, %s27
        %s339 = smul.u32 4, %s27
        %s340 = smul.u32 4, %s27
        %s341 = smul.u32 4, %s27
        %342 = vst [vmem:[%s336] sm:$0xff] 0.0
        %343 = vst [vmem:[%s336 + $0x8] sm:$0xff] 0.0
        %344 = vst [vmem:[%s336 + $0x10] sm:$0xff] 0.0
        %345 = vst [vmem:[%s336 + $0x18] sm:$0xff] 0.0
        %346 = vst [vmem:[%s336 + $0x20] sm:$0xff] 0.0
        %347 = vst [vmem:[%s336 + $0x28] sm:$0xff] 0.0
        %348 = vst [vmem:[%s336 + $0x30] sm:$0xff] 0.0
        %349 = vst [vmem:[%s336 + $0x38] sm:$0xff] 0.0
        %350 = vst [vmem:[%s336 + $0x40] sm:$0xff] 0.0
        %351 = vst [vmem:[%s336 + $0x48] sm:$0xff] 0.0
        %352 = vst [vmem:[%s336 + $0x50] sm:$0xff] 0.0
        %353 = vst [vmem:[%s336 + $0x58] sm:$0xff] 0.0
        %354 = vst [vmem:[%s336 + $0x60] sm:$0xff] 0.0
        %355 = vst [vmem:[%s336 + $0x68] sm:$0xff] 0.0
        %356 = vst [vmem:[%s336 + $0x70] sm:$0xff] 0.0
        %357 = vst [vmem:[%s336 + $0x78] sm:$0xff] 0.0
        %358 = vst [vmem:[%s336 + $0x80] sm:$0xff] 0.0
        %359 = vst [vmem:[%s336 + $0x88] sm:$0xff] 0.0
        %360 = vst [vmem:[%s336 + $0x90] sm:$0xff] 0.0
        %361 = vst [vmem:[%s336 + $0x98] sm:$0xff] 0.0
        %362 = vst [vmem:[%s336 + $0xa0] sm:$0xff] 0.0
        %363 = vst [vmem:[%s336 + $0xa8] sm:$0xff] 0.0
        %364 = vst [vmem:[%s336 + $0xb0] sm:$0xff] 0.0
        %365 = vst [vmem:[%s336 + $0xb8] sm:$0xff] 0.0
        %366 = vst [vmem:[%s336 + $0xc0] sm:$0xff] 0.0
        %367 = vst [vmem:[%s336 + $0xc8] sm:$0xff] 0.0
        %368 = vst [vmem:[%s336 + $0xd0] sm:$0xff] 0.0
        %369 = vst [vmem:[%s336 + $0xd8] sm:$0xff] 0.0
        %370 = vst [vmem:[%s336 + $0xe0] sm:$0xff] 0.0
        %371 = vst [vmem:[%s336 + $0xe8] sm:$0xff] 0.0
        %372 = vst [vmem:[%s336 + $0xf0] sm:$0xff] 0.0
        %373 = vst [vmem:[%s336 + $0xf8] sm:$0xff] 0.0
        %374 = vst [vmem:[%s336 + $0x100] sm:$0xff] 0.0
        %375 = vst [vmem:[%s336 + $0x108] sm:$0xff] 0.0
        %376 = vst [vmem:[%s336 + $0x110] sm:$0xff] 0.0
        %377 = vst [vmem:[%s336 + $0x118] sm:$0xff] 0.0
        %378 = vst [vmem:[%s336 + $0x120] sm:$0xff] 0.0
        %379 = vst [vmem:[%s336 + $0x128] sm:$0xff] 0.0
        %380 = vst [vmem:[%s336 + $0x130] sm:$0xff] 0.0
        %381 = vst [vmem:[%s336 + $0x138] sm:$0xff] 0.0
        %382 = vst [vmem:[%s336 + $0x140] sm:$0xff] 0.0
        %383 = vst [vmem:[%s336 + $0x148] sm:$0xff] 0.0
        %384 = vst [vmem:[%s336 + $0x150] sm:$0xff] 0.0
        %385 = vst [vmem:[%s336 + $0x158] sm:$0xff] 0.0
        %386 = vst [vmem:[%s336 + $0x160] sm:$0xff] 0.0
        %387 = vst [vmem:[%s336 + $0x168] sm:$0xff] 0.0
        %388 = vst [vmem:[%s336 + $0x170] sm:$0xff] 0.0
        %389 = vst [vmem:[%s336 + $0x178] sm:$0xff] 0.0
        %390 = vst [vmem:[%s336 + $0x180] sm:$0xff] 0.0
        %391 = vst [vmem:[%s336 + $0x188] sm:$0xff] 0.0
        %392 = vst [vmem:[%s336 + $0x190] sm:$0xff] 0.0
        %393 = vst [vmem:[%s336 + $0x198] sm:$0xff] 0.0
        %394 = vst [vmem:[%s336 + $0x1a0] sm:$0xff] 0.0
        %395 = vst [vmem:[%s336 + $0x1a8] sm:$0xff] 0.0
        %396 = vst [vmem:[%s336 + $0x1b0] sm:$0xff] 0.0
        %397 = vst [vmem:[%s336 + $0x1b8] sm:$0xff] 0.0
        %398 = vst [vmem:[%s336 + $0x1c0] sm:$0xff] 0.0
        %399 = vst [vmem:[%s336 + $0x1c8] sm:$0xff] 0.0
        %400 = vst [vmem:[%s336 + $0x1d0] sm:$0xff] 0.0
        %401 = vst [vmem:[%s336 + $0x1d8] sm:$0xff] 0.0
        %402 = vst [vmem:[%s336 + $0x1e0] sm:$0xff] 0.0
        %403 = vst [vmem:[%s336 + $0x1e8] sm:$0xff] 0.0
        %404 = vst [vmem:[%s336 + $0x1f0] sm:$0xff] 0.0
        %405 = vst [vmem:[%s336 + $0x1f8] sm:$0xff] 0.0
        %v406 = vld [vmem:[%s270] sm:$0xff]
        %v407 = vld [vmem:[%s270 + $0x8] sm:$0xff]
        %v408 = vld [vmem:[%s270 + $0x10] sm:$0xff]
        %v409 = vld [vmem:[%s270 + $0x18] sm:$0xff]
        %v410 = vld [vmem:[%s270 + $0x20] sm:$0xff]
        %v411 = vld [vmem:[%s270 + $0x28] sm:$0xff]
        %v412 = vld [vmem:[%s270 + $0x30] sm:$0xff]
        %v413 = vld [vmem:[%s270 + $0x38] sm:$0xff]
        %v414 = vld [vmem:[%s270 + $0x40] sm:$0xff]
        %v415 = vld [vmem:[%s270 + $0x48] sm:$0xff]
        %v416 = vld [vmem:[%s270 + $0x50] sm:$0xff]
        %v417 = vld [vmem:[%s270 + $0x58] sm:$0xff]
        %v418 = vld [vmem:[%s270 + $0x60] sm:$0xff]
        %v419 = vld [vmem:[%s270 + $0x68] sm:$0xff]
        %v420 = vld [vmem:[%s270 + $0x70] sm:$0xff]
        %v421 = vld [vmem:[%s270 + $0x78] sm:$0xff]
        %v422 = vld [vmem:[%s270 + $0x80] sm:$0xff]
        %v423 = vld [vmem:[%s270 + $0x88] sm:$0xff]
        %v424 = vld [vmem:[%s270 + $0x90] sm:$0xff]
        %v425 = vld [vmem:[%s270 + $0x98] sm:$0xff]
        %v426 = vld [vmem:[%s279] sm:$0xff]
        %v427 = vld [vmem:[%s279 + $0x8] sm:$0xff]
        %v428 = vld [vmem:[%s279 + $0x10] sm:$0xff]
        %v429 = vld [vmem:[%s279 + $0x18] sm:$0xff]
        %v430 = vld [vmem:[%s279 + $0x20] sm:$0xff]
        %v431 = vld [vmem:[%s279 + $0x28] sm:$0xff]
        %v432 = vld [vmem:[%s279 + $0x30] sm:$0xff]
        %v433 = vld [vmem:[%s279 + $0x38] sm:$0xff]
        %v434 = vld [vmem:[%s279 + $0x40] sm:$0xff]
        %v435 = vld [vmem:[%s279 + $0x48] sm:$0xff]
        %v436 = vld [vmem:[%s279 + $0x50] sm:$0xff]
        %v437 = vld [vmem:[%s279 + $0x58] sm:$0xff]
        %v438 = vld [vmem:[%s279 + $0x60] sm:$0xff]
        %v439 = vld [vmem:[%s279 + $0x68] sm:$0xff]
        %v440 = vld [vmem:[%s279 + $0x70] sm:$0xff]
        %v441 = vld [vmem:[%s279 + $0x78] sm:$0xff]
        %v442 = vld [vmem:[%s279 + $0x80] sm:$0xff]
        %v443 = vld [vmem:[%s279 + $0x88] sm:$0xff]
        %v444 = vld [vmem:[%s279 + $0x90] sm:$0xff]
        %v445 = vld [vmem:[%s279 + $0x98] sm:$0xff]
        %v446 = vmax.f32 %v406, %v426
        %v447 = vmax.f32 %v407, %v427
        %v448 = vmax.f32 %v408, %v428
        %v449 = vmax.f32 %v409, %v429
        %v450 = vmax.f32 %v410, %v430
        %v451 = vmax.f32 %v411, %v431
        %v452 = vmax.f32 %v412, %v432
        %v453 = vmax.f32 %v413, %v433
        %v454 = vmax.f32 %v414, %v434
        %v455 = vmax.f32 %v415, %v435
        %v456 = vmax.f32 %v416, %v436
        %v457 = vmax.f32 %v417, %v437
        %v458 = vmax.f32 %v418, %v438
        %v459 = vmax.f32 %v419, %v439
        %v460 = vmax.f32 %v420, %v440
        %v461 = vmax.f32 %v421, %v441
        %v462 = vmax.f32 %v422, %v442
        %v463 = vmax.f32 %v423, %v443
        %v464 = vmax.f32 %v424, %v444
        %v465 = vmax.f32 %v425, %v445
        %v466 = vmax.f32 %v446, 0.0
        %v467 = vmax.f32 %v447, 0.0
        %v468 = vmax.f32 %v448, 0.0
        %v469 = vmax.f32 %v449, 0.0
        %v470 = vmax.f32 %v450, 0.0
        %v471 = vmax.f32 %v451, 0.0
        %v472 = vmax.f32 %v452, 0.0
        %v473 = vmax.f32 %v453, 0.0
        %v474 = vmax.f32 %v454, 0.0
        %v475 = vmax.f32 %v455, 0.0
        %v476 = vmax.f32 %v456, 0.0
        %v477 = vmax.f32 %v457, 0.0
        %v478 = vmax.f32 %v458, 0.0
        %v479 = vmax.f32 %v459, 0.0
        %v480 = vmax.f32 %v460, 0.0
        %v481 = vmax.f32 %v461, 0.0
        %v482 = vmax.f32 %v462, 0.0
        %v483 = vmax.f32 %v463, 0.0
        %v484 = vmax.f32 %v464, 0.0
        %v485 = vmax.f32 %v465, 0.0
        %486 = vst [vmem:[%s336 + $0x18] sm:$0xff] %v466
        %487 = vst [vmem:[%s336 + $0x20] sm:$0xff] %v467
        %488 = vst [vmem:[%s336 + $0x28] sm:$0xff] %v468
        %489 = vst [vmem:[%s336 + $0x30] sm:$0xff] %v469
        %490 = vst [vmem:[%s336 + $0x38] sm:$0xff] %v470
        %491 = vst [vmem:[%s336 + $0x98] sm:$0xff] %v471
        %492 = vst [vmem:[%s336 + $0xa0] sm:$0xff] %v472
        %493 = vst [vmem:[%s336 + $0xa8] sm:$0xff] %v473
        %494 = vst [vmem:[%s336 + $0xb0] sm:$0xff] %v474
        %495 = vst [vmem:[%s336 + $0xb8] sm:$0xff] %v475
        %496 = vst [vmem:[%s336 + $0x118] sm:$0xff] %v476
        %497 = vst [vmem:[%s336 + $0x120] sm:$0xff] %v477
        %498 = vst [vmem:[%s336 + $0x128] sm:$0xff] %v478
        %499 = vst [vmem:[%s336 + $0x130] sm:$0xff] %v479
        %500 = vst [vmem:[%s336 + $0x138] sm:$0xff] %v480
        %501 = vst [vmem:[%s336 + $0x198] sm:$0xff] %v481
        %502 = vst [vmem:[%s336 + $0x1a0] sm:$0xff] %v482
        %503 = vst [vmem:[%s336 + $0x1a8] sm:$0xff] %v483
        %504 = vst [vmem:[%s336 + $0x1b0] sm:$0xff] %v484
        %505 = vst [vmem:[%s336 + $0x1b8] sm:$0xff] %v485
        %v506 = vld [vmem:[%s336 + $0x30] sm:$0xff]
        %v507 = vld [vmem:[%s336 + $0x38] sm:$0xff]
        %v508 = vld [vmem:[%s336 + $0x40] sm:$0xff]
        %v509 = vld [vmem:[%s336 + $0x48] sm:$0xff]
        %v510 = vld [vmem:[%s336 + $0xb0] sm:$0xff]
        %v511 = vld [vmem:[%s336 + $0xb8] sm:$0xff]
        %v512 = vld [vmem:[%s336 + $0xc0] sm:$0xff]
        %v513 = vld [vmem:[%s336 + $0xc8] sm:$0xff]
        %v514 = vld [vmem:[%s336 + $0x130] sm:$0xff]
        %v515 = vld [vmem:[%s336 + $0x138] sm:$0xff]
        %v516 = vld [vmem:[%s336 + $0x140] sm:$0xff]
        %v517 = vld [vmem:[%s336 + $0x148] sm:$0xff]
        %v518 = vld [vmem:[%s336 + $0x1b0] sm:$0xff]
        %v519 = vld [vmem:[%s336 + $0x1b8] sm:$0xff]
        %v520 = vld [vmem:[%s336 + $0x1c0] sm:$0xff]
        %v521 = vld [vmem:[%s336 + $0x1c8] sm:$0xff]
        %v522 = vld [vmem:[%s288] sm:$0xff]
        %v523 = vld [vmem:[%s288 + $0x8] sm:$0xff]
        %v524 = vld [vmem:[%s288 + $0x10] sm:$0xff]
        %v525 = vld [vmem:[%s288 + $0x18] sm:$0xff]
        %v526 = vld [vmem:[%s288 + $0x20] sm:$0xff]
        %v527 = vld [vmem:[%s288 + $0x28] sm:$0xff]
        %v528 = vld [vmem:[%s288 + $0x30] sm:$0xff]
        %v529 = vld [vmem:[%s288 + $0x38] sm:$0xff]
        %v530 = vld [vmem:[%s288 + $0x40] sm:$0xff]
        %v531 = vld [vmem:[%s288 + $0x48] sm:$0xff]
        %v532 = vld [vmem:[%s288 + $0x50] sm:$0xff]
        %v533 = vld [vmem:[%s288 + $0x58] sm:$0xff]
        %v534 = vld [vmem:[%s288 + $0x60] sm:$0xff]
        %v535 = vld [vmem:[%s288 + $0x68] sm:$0xff]
        %v536 = vld [vmem:[%s288 + $0x70] sm:$0xff]
        %v537 = vld [vmem:[%s288 + $0x78] sm:$0xff]
        %v538 = vmax.f32 %v506, %v522
        %v539 = vmax.f32 %v507, %v523
        %v540 = vmax.f32 %v508, %v524
        %v541 = vmax.f32 %v509, %v525
        %v542 = vmax.f32 %v510, %v526
        %v543 = vmax.f32 %v511, %v527
        %v544 = vmax.f32 %v512, %v528
        %v545 = vmax.f32 %v513, %v529
        %v546 = vmax.f32 %v514, %v530
        %v547 = vmax.f32 %v515, %v531
        %v548 = vmax.f32 %v516, %v532
        %v549 = vmax.f32 %v517, %v533
        %v550 = vmax.f32 %v518, %v534
        %v551 = vmax.f32 %v519, %v535
        %v552 = vmax.f32 %v520, %v536
        %v553 = vmax.f32 %v521, %v537
        %554 = vst [vmem:[%s336 + $0x30] sm:$0xff] %v538
        %555 = vst [vmem:[%s336 + $0x38] sm:$0xff] %v539
        %556 = vst [vmem:[%s336 + $0x40] sm:$0xff] %v540
        %557 = vst [vmem:[%s336 + $0x48] sm:$0xff] %v541
        %558 = vst [vmem:[%s336 + $0xb0] sm:$0xff] %v542
        %559 = vst [vmem:[%s336 + $0xb8] sm:$0xff] %v543
        %560 = vst [vmem:[%s336 + $0xc0] sm:$0xff] %v544
        %561 = vst [vmem:[%s336 + $0xc8] sm:$0xff] %v545
        %562 = vst [vmem:[%s336 + $0x130] sm:$0xff] %v546
        %563 = vst [vmem:[%s336 + $0x138] sm:$0xff] %v547
        %564 = vst [vmem:[%s336 + $0x140] sm:$0xff] %v548
        %565 = vst [vmem:[%s336 + $0x148] sm:$0xff] %v549
        %566 = vst [vmem:[%s336 + $0x1b0] sm:$0xff] %v550
        %567 = vst [vmem:[%s336 + $0x1b8] sm:$0xff] %v551
        %568 = vst [vmem:[%s336 + $0x1c0] sm:$0xff] %v552
        %569 = vst [vmem:[%s336 + $0x1c8] sm:$0xff] %v553
        %v570 = vld [vmem:[%s336 + $0x40] sm:$0xff]
        %v571 = vld [vmem:[%s336 + $0x48] sm:$0xff]
        %v572 = vld [vmem:[%s336 + $0x50] sm:$0xff]
        %v573 = vld [vmem:[%s336 + $0x58] sm:$0xff]
        %v574 = vld [vmem:[%s336 + $0x60] sm:$0xff]
        %v575 = vld [vmem:[%s336 + $0xc0] sm:$0xff]
        %v576 = vld [vmem:[%s336 + $0xc8] sm:$0xff]
        %v577 = vld [vmem:[%s336 + $0xd0] sm:$0xff]
        %v578 = vld [vmem:[%s336 + $0xd8] sm:$0xff]
        %v579 = vld [vmem:[%s336 + $0xe0] sm:$0xff]
        %v580 = vld [vmem:[%s336 + $0x140] sm:$0xff]
        %v581 = vld [vmem:[%s336 + $0x148] sm:$0xff]
        %v582 = vld [vmem:[%s336 + $0x150] sm:$0xff]
        %v583 = vld [vmem:[%s336 + $0x158] sm:$0xff]
        %v584 = vld [vmem:[%s336 + $0x160] sm:$0xff]
        %v585 = vld [vmem:[%s336 + $0x1c0] sm:$0xff]
        %v586 = vld [vmem:[%s336 + $0x1c8] sm:$0xff]
        %v587 = vld [vmem:[%s336 + $0x1d0] sm:$0xff]
        %v588 = vld [vmem:[%s336 + $0x1d8] sm:$0xff]
        %v589 = vld [vmem:[%s336 + $0x1e0] sm:$0xff]
        %v590 = vld [vmem:[%s297] sm:$0xff]
        %v591 = vld [vmem:[%s297 + $0x8] sm:$0xff]
        %v592 = vld [vmem:[%s297 + $0x10] sm:$0xff]
        %v593 = vld [vmem:[%s297 + $0x18] sm:$0xff]
        %v594 = vld [vmem:[%s297 + $0x20] sm:$0xff]
        %v595 = vld [vmem:[%s297 + $0x28] sm:$0xff]
        %v596 = vld [vmem:[%s297 + $0x30] sm:$0xff]
        %v597 = vld [vmem:[%s297 + $0x38] sm:$0xff]
        %v598 = vld [vmem:[%s297 + $0x40] sm:$0xff]
        %v599 = vld [vmem:[%s297 + $0x48] sm:$0xff]
        %v600 = vld [vmem:[%s297 + $0x50] sm:$0xff]
        %v601 = vld [vmem:[%s297 + $0x58] sm:$0xff]
        %v602 = vld [vmem:[%s297 + $0x60] sm:$0xff]
        %v603 = vld [vmem:[%s297 + $0x68] sm:$0xff]
        %v604 = vld [vmem:[%s297 + $0x70] sm:$0xff]
        %v605 = vld [vmem:[%s297 + $0x78] sm:$0xff]
        %v606 = vld [vmem:[%s297 + $0x80] sm:$0xff]
        %v607 = vld [vmem:[%s297 + $0x88] sm:$0xff]
        %v608 = vld [vmem:[%s297 + $0x90] sm:$0xff]
        %v609 = vld [vmem:[%s297 + $0x98] sm:$0xff]
        %v610 = vmax.f32 %v570, %v590
        %v611 = vmax.f32 %v571, %v591
        %v612 = vmax.f32 %v572, %v592
        %v613 = vmax.f32 %v573, %v593
        %v614 = vmax.f32 %v574, %v594
        %v615 = vmax.f32 %v575, %v595
        %v616 = vmax.f32 %v576, %v596
        %v617 = vmax.f32 %v577, %v597
        %v618 = vmax.f32 %v578, %v598
        %v619 = vmax.f32 %v579, %v599
        %v620 = vmax.f32 %v580, %v600
        %v621 = vmax.f32 %v581, %v601
        %v622 = vmax.f32 %v582, %v602
        %v623 = vmax.f32 %v583, %v603
        %v624 = vmax.f32 %v584, %v604
        %v625 = vmax.f32 %v585, %v605
        %v626 = vmax.f32 %v586, %v606
        %v627 = vmax.f32 %v587, %v607
        %v628 = vmax.f32 %v588, %v608
        %v629 = vmax.f32 %v589, %v609
        %630 = vst [vmem:[%s336 + $0x40] sm:$0xff] %v610
        %631 = vst [vmem:[%s336 + $0x48] sm:$0xff] %v611
        %632 = vst [vmem:[%s336 + $0x50] sm:$0xff] %v612
        %633 = vst [vmem:[%s336 + $0x58] sm:$0xff] %v613
        %634 = vst [vmem:[%s336 + $0x60] sm:$0xff] %v614
        %635 = vst [vmem:[%s336 + $0xc0] sm:$0xff] %v615
        %636 = vst [vmem:[%s336 + $0xc8] sm:$0xff] %v616
        %637 = vst [vmem:[%s336 + $0xd0] sm:$0xff] %v617
        %638 = vst [vmem:[%s336 + $0xd8] sm:$0xff] %v618
        %639 = vst [vmem:[%s336 + $0xe0] sm:$0xff] %v619
        %640 = vst [vmem:[%s336 + $0x140] sm:$0xff] %v620
        %641 = vst [vmem:[%s336 + $0x148] sm:$0xff] %v621
        %642 = vst [vmem:[%s336 + $0x150] sm:$0xff] %v622
        %643 = vst [vmem:[%s336 + $0x158] sm:$0xff] %v623
        %644 = vst [vmem:[%s336 + $0x160] sm:$0xff] %v624
        %645 = vst [vmem:[%s336 + $0x1c0] sm:$0xff] %v625
        %646 = vst [vmem:[%s336 + $0x1c8] sm:$0xff] %v626
        %647 = vst [vmem:[%s336 + $0x1d0] sm:$0xff] %v627
        %648 = vst [vmem:[%s336 + $0x1d8] sm:$0xff] %v628
        %649 = vst [vmem:[%s336 + $0x1e0] sm:$0xff] %v629
        %s650 = sand.u32 %s139, 1
        %s651 = scalar_lea.sflag [#allocation4], %s650
        %s652 = sand.u32 %s139, 1
        %s653 = smul.addr %s652, 512
        %s654 = scalar_lea.vmem [#allocation10], %s653
        // Predicated region
        $region53: #{tpu_custom_call.1} parent=35 // pred_check
          %p655 = pneg %p149
        $region54: #{tpu_custom_call.1} parent=35 // pred_check_branch
          %657 = sbr.rel (%p655) target = $region56
        $region55: #{tpu_custom_call.1} parent=35 // pred_region
          %s658 = smul.u32 4, %s27
          %s660 = ssub.s32 8192, 8192
          %661 = vsyncadd %s651, %s660
          %s662 = smul.addr %s658, 16
          %s663 = smul.addr %s662, 128
          %s664 = scalar_lea.hbm %s4, %s663
          %s665 = sshll.u32 %s654, 4
          %s666 = int_to_ptr.vmem [resolvable:$true] %s665
          %671 = dma.vmem_to_hbm [thread:$0]  %s666, 8192, %s664, %s651, 128, 128, 8
        $region56: #{tpu_custom_call.1} parent=35 // pred_fallthru
          _
      $region36: #{tpu_custom_call.1} parent=5 // pred_fallthru
        _
      %p672 = scmp.le.s32.totalorder 2, %s22
      // Predicated region
      $region57: #{tpu_custom_call.1} parent=5 // pred_check
        %p673 = pneg %p672
      $region58: #{tpu_custom_call.1} parent=5 // pred_check_branch
        %675 = sbr.rel (%p673) target = $region60
      $region59: #{tpu_custom_call.1} parent=5 // pred_region
        %s676 = ssub.s32 %s22, 2
        // Predicated region
        $region61: #{tpu_custom_call.1} parent=59 // pred_check
          %p677 = pneg %p155
        $region62: #{tpu_custom_call.1} parent=59 // pred_check_branch
          %679 = sbr.rel (%p677) target = $region64
        $region63: #{tpu_custom_call.1} parent=59 // pred_region
          %s680 = sand.u32 %s140, 1
          %s681 = scalar_lea.sflag [#allocation4], %s680
          %s682 = sand.u32 %s140, 1
          %s683 = smul.addr %s682, 512
          %s684 = scalar_lea.vmem [#allocation10], %s683
          %685 = dma.done %s681, 8192
        $region64: #{tpu_custom_call.1} parent=59 // pred_fallthru
          _
      $region60: #{tpu_custom_call.1} parent=5 // pred_fallthru
        _
    $region6: #{tpu_custom_call.1} parent=1 // loop_footer
      %s26 = sadd.s32 1, %s22
    $region7: #{tpu_custom_call.1} parent=1 // loop_footer_branch
      %21 = sbr.rel target = $region3
    $region8: #{tpu_custom_call.1} parent=1 // loop_exit
      _
    %686 = vsyncpa [#allocation3], 1
    %s687 = scalar_lea.sflag [#allocation3], 1
    %688 = vsyncpa %s687, 1
    %689 = vsyncpa [#allocation6], 1
    %s690 = scalar_lea.sflag [#allocation6], 1
    %691 = vsyncpa %s690, 1
    %692 = vsyncpa [#allocation9], 1
    %s693 = scalar_lea.sflag [#allocation9], 1
    %694 = vsyncpa %s693, 1
    %695 = vsyncpa [#allocation4], 1
    %s696 = scalar_lea.sflag [#allocation4], 1
    %697 = vsyncpa %s696, 1

</llo_original>
